<compile_context>
chip_gen: v7x
topology: tpu7x:2x2x1
jax: 0.10.0
libtpu: 0.0.40
codegen_flags: <defaults>
</compile_context>

<pallas_src>
import jax
import jax.numpy as jnp
from jax.experimental import pallas as pl
from jax.experimental.pallas import tpu as pltpu


def _align_corners_matrix(out_size: int, in_size: int) -> jnp.ndarray:
    """(out_size, in_size) 1-D bilinear interpolation matrix, align_corners=True."""
    if in_size == 1:
        return jnp.ones((out_size, 1), jnp.float32)
    src = jnp.arange(out_size, dtype=jnp.float32) * (in_size - 1) / (out_size - 1)
    i0 = jnp.clip(jnp.floor(src).astype(jnp.int32), 0, in_size - 2)
    frac = src - i0.astype(jnp.float32)
    rows = jnp.arange(out_size)
    w = jnp.zeros((out_size, in_size), jnp.float32)
    w = w.at[rows, i0].add(1.0 - frac)
    w = w.at[rows, i0 + 1].add(frac)
    return w


def _upsample_kernel(x_ref, k_ref, o_ref):
    # x_ref: (tb, H*W)   k_ref: (H*W, tn)   o_ref: (tb, tn)
    # Single large-M MXU matmul; f32 accumulation, store in the output dtype.
    o_ref[...] = jnp.dot(
        x_ref[...], k_ref[...], preferred_element_type=jnp.float32
    ).astype(o_ref.dtype)


def _vmem_limit_bytes() -> int:
    """Per-generation VMEM limit: 96 MiB on v5e/v6e (128 MiB physical), 32 MiB
    on v7x (64 MiB physical) or when the chip cannot be identified."""
    try:
        kind = jax.devices()[0].device_kind.lower()
    except Exception:
        kind = ""
    if "v5" in kind or "v6" in kind:
        return 96 * 1024 * 1024
    return 32 * 1024 * 1024


def _block_spec(shape, index_map, buffer_count=None):
    """BlockSpec with optional pipeline depth; falls back to the default 2-deep
    pipeline if this jax build does not expose pipeline_mode."""
    if buffer_count is None:
        return pl.BlockSpec(shape, index_map)
    try:
        return pl.BlockSpec(shape, index_map, pipeline_mode=pl.Buffered(buffer_count))
    except Exception:
        return pl.BlockSpec(shape, index_map)


def _choose_tiling(bc: int, hw: int, hw2: int, dsize: int, vmem_limit: int):
    """Pick (tb, row_tiles, col_tiles) for the (bc, hw) @ (hw, hw2) kernel."""
    # Leave headroom for compiler scratch / semaphores below the declared limit.
    budget = vmem_limit - 4 * 1024 * 1024
    # Resident f32 Kronecker matrix, single-buffered (upper bound when col-tiled).
    k_bytes = hw * hw2 * 4
    # Per-row cost: triple-buffered input + double-buffered output + f32 result.
    per_row = hw * dsize * 3 + hw2 * dsize * 2 + hw2 * 4
    cap = 2048 if vmem_limit > 48 * 1024 * 1024 else 512
    tb = max(8, min(cap, max(budget - k_bytes, 0) // per_row))

    # Aim for >= ~8 grid steps along bc (megacore split + pipeline depth), but do
    # not shrink blocks below 64 rows just for step count.
    rows_for_8_steps = -(-bc // 8)
    rows_for_8_steps = max(64, ((rows_for_8_steps + 7) // 8) * 8)
    tb = min(tb, rows_for_8_steps)

    # MXU-friendly rounding: multiple of 256 when possible, else multiple of 8.
    if tb >= 256:
        tb = (tb // 256) * 256
    else:
        tb = max(8, (tb // 8) * 8)

    if bc <= 8:
        tb = bc                               # single full-extent block
    else:
        tb = max(8, min(tb, (bc // 8) * 8))   # multiple of 8, ragged last block OK
    row_tiles = -(-bc // tb)

    # If bc alone cannot provide enough steps, split the output columns too so
    # both v7x TensorCores get work and the DMA pipeline has >= ~4 steps.
    col_tiles = 1
    if row_tiles < 4 and hw2 >= 256:
        for c in (2, 4, 8):
            if hw2 % (c * 128) == 0:
                col_tiles = c
                if row_tiles * c >= 4:
                    break
    return tb, row_tiles, col_tiles


def upsample_bilinear_x2(x: jnp.ndarray) -> jnp.ndarray:
    """x: (N, C, H, W) -> (N, C, 2H, 2W), bilinear, align_corners=True."""
    N, C, H, W = x.shape
    H2, W2 = 2 * H, 2 * W
    hw, hw2 = H * W, H2 * W2
    bc = N * C
    dsize = jnp.dtype(x.dtype).itemsize

    # TODO(synk): for large feature maps (H, W >~ 48) the dense Kronecker matrix
    # grows as (H*W)^2 and overflows VMEM; switch to the separable
    # row-matmul + column-matmul formulation there.
    wh = _align_corners_matrix(H2, H)          # (H2, H)
    ww = _align_corners_matrix(W2, W)          # (W2, W)
    # K[(h, w), (o, v)] = Wh[o, h] * Ww[v, w]  so that  out_flat = x_flat @ K.
    # Kept in f32 regardless of x.dtype so the interpolation weights stay exact.
    k = jnp.einsum("oh,vw->hwov", wh, ww).reshape(hw, hw2)

    vmem_limit = _vmem_limit_bytes()
    tb, row_tiles, col_tiles = _choose_tiling(bc, hw, hw2, dsize, vmem_limit)
    tn = hw2 // col_tiles

    x_flat = x.reshape(bc, hw)                 # contiguous reshape, no extra HBM pass
    grid = (row_tiles, col_tiles)              # ragged last row block handled by Pallas

    if col_tiles == 1:
        # Interpolation matrix stays resident in VMEM for the whole call.
        k_spec = _block_spec((hw, hw2), lambda i, j: (0, 0), buffer_count=1)
    else:
        k_spec = _block_spec((hw, tn), lambda i, j: (0, j))
    x_buffers = 3 if (col_tiles == 1 and row_tiles >= 4) else None
    x_spec = _block_spec((tb, hw), lambda i, j: (i, 0), buffer_count=x_buffers)
    out_spec = pl.BlockSpec((tb, tn), lambda i, j: (i, j))

    cost = pl.CostEstimate(
        flops=2 * bc * hw * hw2,
        transcendentals=0,
        bytes_accessed=bc * (hw + hw2) * dsize + row_tiles * hw * hw2 * 4,
    )

    out_flat = pl.pallas_call(
        _upsample_kernel,
        out_shape=jax.ShapeDtypeStruct((bc, hw2), x.dtype),
        grid=grid,
        in_specs=[x_spec, k_spec],
        out_specs=out_spec,
        compiler_params=pltpu.CompilerParams(
            dimension_semantics=("parallel", "parallel"),
            vmem_limit_bytes=vmem_limit,
        ),
        cost_estimate=cost,
    )(x_flat, k)

    return out_flat.reshape(N, C, H2, W2)


def _reference_upsample(x: jnp.ndarray) -> jnp.ndarray:
    """Pure-JAX gather-based reference matching PyTorch bilinear align_corners=True."""
    N, C, H, W = x.shape
    H2, W2 = 2 * H, 2 * W
    ys = jnp.arange(H2, dtype=jnp.float32) * ((H - 1) / max(H2 - 1, 1))
    xs = jnp.arange(W2, dtype=jnp.float32) * ((W - 1) / max(W2 - 1, 1))
    y0 = jnp.clip(jnp.floor(ys).astype(jnp.int32), 0, max(H - 2, 0))
    x0 = jnp.clip(jnp.floor(xs).astype(jnp.int32), 0, max(W - 2, 0))
    y1 = jnp.minimum(y0 + 1, H - 1)
    x1 = jnp.minimum(x0 + 1, W - 1)
    fy = (ys - y0)[None, None, :, None]
    fx = (xs - x0)[None, None, None, :]
    top = x[:, :, y0, :] * (1.0 - fy) + x[:, :, y1, :] * fy
    out = top[:, :, :, x0] * (1.0 - fx) + top[:, :, :, x1] * fx
    return out


if __name__ == "__main__":
    key = jax.random.PRNGKey(0)
    k1, k2 = jax.random.split(key)

    # Case 1: small bc -> column-split grid (keeps both v7x TensorCores busy).
    x1 = jax.random.normal(k1, (2, 4, 16, 16), dtype=jnp.float32)
    y1 = jax.block_until_ready(upsample_bilinear_x2(x1))
    assert y1.shape == (2, 4, 32, 32), y1.shape
    assert jnp.allclose(y1, _reference_upsample(x1), atol=1e-5, rtol=1e-5), "case 1 mismatch"

    # Case 2: larger bc -> row-tiled grid with resident single-buffered K and a
    # triple-buffered input stream.
    x2 = jax.random.normal(k2, (8, 32, 8, 8), dtype=jnp.float32)
    y2 = jax.block_until_ready(upsample_bilinear_x2(x2))
    assert y2.shape == (8, 32, 16, 16), y2.shape
    assert jnp.allclose(y2, _reference_upsample(x2), atol=1e-5, rtol=1e-5), "case 2 mismatch"

    print("KERNEL_OK")
</pallas_src>

<mosaic_0001>
module attributes {stable_mosaic.version = 11 : i64} {
  func.func @_upsample_kernel(%arg0: i32, %arg1: i32, %arg2: memref<8x256xf32, #tpu.memory_space<vmem>>, %arg3: memref<256x256xf32, #tpu.memory_space<vmem>>, %arg4: memref<8x256xf32, #tpu.memory_space<vmem>>) attributes {dimension_semantics = [#tpu.dimension_semantics<parallel>, #tpu.dimension_semantics<parallel>], iteration_bounds = array<i64: 1, 4>, scalar_prefetch = 0 : i64, scratch_operands = 0 : i64, tpu.core_type = #tpu.core_type<tc>, window_params = [{transform_indices = @transform_0, window_bounds = array<i64: 8, 256>}, {transform_indices = @transform_1, window_bounds = array<i64: 256, 256>}, {transform_indices = @transform_2, window_bounds = array<i64: 8, 256>}]} {
    %c0 = arith.constant 0 : index
    %c0_0 = arith.constant 0 : index
    %0 = vector.load %arg2[%c0, %c0_0] : memref<8x256xf32, #tpu.memory_space<vmem>>, vector<8x256xf32>
    %c0_1 = arith.constant 0 : index
    %c0_2 = arith.constant 0 : index
    %1 = vector.load %arg3[%c0_1, %c0_2] : memref<256x256xf32, #tpu.memory_space<vmem>>, vector<256x256xf32>
    %cst = arith.constant dense<0.000000e+00> : vector<8x256xf32>
    %2 = tpu.matmul %0, %1, %cst {dimension_numbers = #tpu.dot_dimension_numbers<[1], [0], [0], [1], [0, 0, 1, 1], [], []>} : vector<8x256xf32>, vector<256x256xf32>, vector<8x256xf32> -> vector<8x256xf32>
    %c0_3 = arith.constant 0 : index
    %c0_4 = arith.constant 0 : index
    %3 = vector.load %arg4[%c0_3, %c0_4] : memref<8x256xf32, #tpu.memory_space<vmem>>, vector<8x256xf32>
    tpu.vector_store %arg4[%c0_3, %c0_4], %2 {strides = array<i32>} : memref<8x256xf32, #tpu.memory_space<vmem>>, vector<8x256xf32>,
    return
  }
  func.func @transform_0(%arg0: i32, %arg1: i32) -> (i32, i32) {
    %c0_i32 = arith.constant 0 : i32
    %c0_i32_0 = arith.constant 0 : i32
    return %arg0, %c0_i32 : i32, i32
  }
  func.func @transform_1(%arg0: i32, %arg1: i32) -> (i32, i32) {
    %c0_i32 = arith.constant 0 : i32
    %c0_i32_0 = arith.constant 0 : i32
    return %c0_i32, %arg1 : i32, i32
  }
  func.func @transform_2(%arg0: i32, %arg1: i32) -> (i32, i32) {
    %c0_i32 = arith.constant 0 : i32
    return %arg0, %arg1 : i32, i32
  }
}

</mosaic_0001>

<llo_original>
// kernel: tpu_custom_call.1
$region0: #{tpu_custom_call.1}
  #allocation0 [shape = 'u32[]', space=smem, size = 0x4, offset = 0x4, fixed_abs, tag = 'smem constant byte address 0x4 - core index']
  #allocation1 [shape = 'u32[144,128]{1,0:T(1,128)}', space=vmem, size = 0x12000, scoped, tag = 'internal scratch']
  %s0 = inlined_call_operand.hbm [shape: f32[8,256], index: 0, kind: input, shape index: {}]
  %s1 = inlined_call_operand.hbm [shape: f32[256,1024], index: 1, kind: input, shape index: {}]
  %s2 = inlined_call_operand.hbm [shape: f32[8,1024], index: 2, kind: output, shape index: {}]
  %s3 = sld [smem:[#allocation0]]
  $region49: #{tpu_custom_call.1} parent=0
    _
  %s5 = ssub.s32 1, %s3
  %s6 = scalar_select 0, %s5, %s3
  $region1: #{tpu_custom_call.1} parent=0
    #allocation2 [shape = 'u8[8192]{0}', space=vmem, size = 0x2000, scoped, tag = 'input window, operand 0, single buffered']
    #allocation3 [shape = 's32[2]{0}', space=sflag, size = 0x8, scoped, tag = 'scoped memory for tpu_custom_call.1']
    #allocation4 [shape = 's32[2]{0}', space=sflag, size = 0x8, scoped, tag = 'scoped memory for tpu_custom_call.1']
    #allocation5 [shape = 'u8[524288]{0}', space=vmem, size = 0x80000, scoped, tag = 'input window, operand 1']
    #allocation6 [shape = 's32[2]{0}', space=sflag, size = 0x8, scoped, tag = 'scoped memory for tpu_custom_call.1']
    #allocation7 [shape = 'u8[16384]{0}', space=vmem, size = 0x4000, scoped, tag = 'output window, operand 0']
    %7 = vsyncpa [#allocation3], 0
    %8 = vsyncpa [#allocation6], 0
    %s9 = scalar_lea.sflag [#allocation6], 1
    %10 = vsyncpa %s9, 0
    %11 = vsyncpa [#allocation4], 0
    %s12 = scalar_lea.sflag [#allocation4], 1
    %13 = vsyncpa %s12, 0
    loop: start=0, step=1, limit=6
    $region2: #{tpu_custom_call.1} parent=1 // loop_pre_header
      _
    $region3: #{tpu_custom_call.1} parent=1 // loop_header
      %s15 = sphi 0, %s19
      %p16 = scmp.ge.s32.totalorder %s15, 6
      %s22 = sphi 0, %s34
      %s23 = sphi 0, %s30
      %s24 = sphi 0, %s22
      %s25 = sphi 0, %s23
      %s26 = sphi 0, %s24
      %s27 = sphi 0, %s25
      %s37 = sphi 0, %s39
      %s40 = sphi 0, %s37
      %s41 = sphi 0, %s40
      %s57 = sphi 0, %s41
      %s63 = sphi 0, %s65
      %s66 = sphi 0, %s63
      %s67 = sphi 0, %s66
      %s83 = sphi 0, %s67
      %s91 = sphi 0, %s93
      %s94 = sphi 0, %s91
      %s95 = sphi 0, %s94
      %s111 = sphi 0, %s95
    $region4: #{tpu_custom_call.1} parent=1 // loop_header_branch
      %18 = sbr.rel (%p16) target = $region8
    $region5: #{tpu_custom_call.1} parent=1 // loop_body
      %s20 = ssub.s32 %s15, 1
      %s21 = ssub.s32 %s15, 2
      %s28 = sadd.s32 1, %s23
      %p29 = scmp.ge.s32.totalorder %s28, 4
      %s30 = scalar_select %p29, 0, %s28
      %s31 = sadd.s32 1, %s22
      %s32 = scalar_select %p29, %s31, %s22
      %p33 = scmp.ge.s32.totalorder %s32, 1
      %s34 = scalar_select %p33, 0, %s32
      %s35 = ssub.s32 %s22, %s34
      %p36 = scmp.eq.s32.totalorder %s35, 0
      %s38 = sadd.s32 %s37, 1
      %s39 = scalar_select %p36, %s37, %s38
      %p42 = pneg %p36
      %p43 = scmp.eq.s32.totalorder %s15, 3
      %p44 = por %p42, %p43
      %p45 = scmp.ne.s32.totalorder %s37, %s40
      %p46 = scmp.eq.s32.totalorder %s15, 0
      %p47 = por %p45, %p46
      %p48 = scmp.ne.s32.totalorder %s37, %s40
      %p49 = scmp.eq.s32.totalorder %s20, 3
      %p50 = por %p48, %p49
      %p51 = scmp.ne.s32.totalorder %s40, %s41
      %p52 = scmp.eq.s32.totalorder %s20, 0
      %p53 = por %p51, %p52
      %p54 = scmp.ne.s32.totalorder %s40, %s41
      %p55 = scmp.eq.s32.totalorder %s21, 3
      %p56 = por %p54, %p55
      %p58 = scmp.ne.s32.totalorder %s41, %s57
      %p59 = scmp.eq.s32.totalorder %s21, 0
      %p60 = por %p58, %p59
      %s61 = ssub.s32 %s23, %s30
      %p62 = scmp.eq.s32.totalorder %s61, 0
      %s64 = sadd.s32 %s63, 1
      %s65 = scalar_select %p62, %s63, %s64
      %p68 = pneg %p62
      %p69 = scmp.eq.s32.totalorder %s15, 3
      %p70 = por %p68, %p69
      %p71 = scmp.ne.s32.totalorder %s63, %s66
      %p72 = scmp.eq.s32.totalorder %s15, 0
      %p73 = por %p71, %p72
      %p74 = scmp.ne.s32.totalorder %s63, %s66
      %p75 = scmp.eq.s32.totalorder %s20, 3
      %p76 = por %p74, %p75
      %p77 = scmp.ne.s32.totalorder %s66, %s67
      %p78 = scmp.eq.s32.totalorder %s20, 0
      %p79 = por %p77, %p78
      %p80 = scmp.ne.s32.totalorder %s66, %s67
      %p81 = scmp.eq.s32.totalorder %s21, 3
      %p82 = por %p80, %p81
      %p84 = scmp.ne.s32.totalorder %s67, %s83
      %p85 = scmp.eq.s32.totalorder %s21, 0
      %p86 = por %p84, %p85
      %s87 = ssub.s32 %s22, %s34
      %s88 = ssub.s32 %s23, %s30
      %s89 = sor.u32 %s87, %s88
      %p90 = scmp.eq.s32.totalorder %s89, 0
      %s92 = sadd.s32 %s91, 1
      %s93 = scalar_select %p90, %s91, %s92
      %p96 = pneg %p90
      %p97 = scmp.eq.s32.totalorder %s15, 3
      %p98 = por %p96, %p97
      %p99 = scmp.ne.s32.totalorder %s91, %s94
      %p100 = scmp.eq.s32.totalorder %s15, 0
      %p101 = por %p99, %p100
      %p102 = scmp.ne.s32.totalorder %s91, %s94
      %p103 = scmp.eq.s32.totalorder %s20, 3
      %p104 = por %p102, %p103
      %p105 = scmp.ne.s32.totalorder %s94, %s95
      %p106 = scmp.eq.s32.totalorder %s20, 0
      %p107 = por %p105, %p106
      %p108 = scmp.ne.s32.totalorder %s94, %s95
      %p109 = scmp.eq.s32.totalorder %s21, 3
      %p110 = por %p108, %p109
      %p112 = scmp.ne.s32.totalorder %s95, %s111
      %p113 = scmp.eq.s32.totalorder %s21, 0
      %p114 = por %p112, %p113
      %p115 = scmp.le.s32.totalorder 1, %s15
      %p116 = scmp.lt.s32.totalorder %s15, 5
      %p117 = pnand %p115, %p116
      %p118 = pneg %p117
      // Predicated region
      $region9: #{tpu_custom_call.1} parent=5 // pred_check
        _
      $region10: #{tpu_custom_call.1} parent=5 // pred_check_branch
        %120 = sbr.rel (%p117) target = $region12
      $region11: #{tpu_custom_call.1} parent=5 // pred_region
        %s121 = ssub.s32 %s15, 1
        // Predicated region
        $region13: #{tpu_custom_call.1} parent=11 // pred_check
          %p122 = pneg %p53
        $region14: #{tpu_custom_call.1} parent=11 // pred_check_branch
          %124 = sbr.rel (%p122) target = $region16
        $region15: #{tpu_custom_call.1} parent=11 // pred_region
          %s126 = ssub.s32 256, 256
          %127 = vsyncadd [#allocation3], %s126
          %s128 = smul.addr %s24, 2
          %s129 = smul.addr %s128, 128
          %s130 = scalar_lea.hbm %s0, %s129
          %s132 = sshll.u32 [#allocation2], 4
          %s133 = int_to_ptr.vmem [resolvable:$true] %s132
          %135 = dma.hbm_to_vmem [thread:$0]  %s130, 256, %s133, [#allocation3]
        $region16: #{tpu_custom_call.1} parent=11 // pred_fallthru
          _
      $region12: #{tpu_custom_call.1} parent=5 // pred_fallthru
        _
      %p136 = scmp.lt.s32.totalorder %s15, 4
      // Predicated region
      $region17: #{tpu_custom_call.1} parent=5 // pred_check
        %p137 = pneg %p136
      $region18: #{tpu_custom_call.1} parent=5 // pred_check_branch
        %139 = sbr.rel (%p137) target = $region20
      $region19: #{tpu_custom_call.1} parent=5 // pred_region
        // Predicated region
        $region21: #{tpu_custom_call.1} parent=19 // pred_check
          %p140 = pneg %p73
        $region22: #{tpu_custom_call.1} parent=19 // pred_check_branch
          %142 = sbr.rel (%p140) target = $region24
        $region23: #{tpu_custom_call.1} parent=19 // pred_region
          %s143 = sand.u32 %s63, 1
          %s144 = scalar_lea.sflag [#allocation6], %s143
          %s145 = sand.u32 %s63, 1
          %s146 = smul.addr %s145, 512
          %s147 = scalar_lea.vmem [#allocation5], %s146
          %s148 = smul.u32 2, %s23
          %s150 = ssub.s32 8192, 8192
          %151 = vsyncadd %s144, %s150
          %s152 = smul.addr %s148, 128
          %s153 = scalar_lea.hbm %s1, %s152
          %s154 = sshll.u32 %s147, 4
          %s155 = int_to_ptr.vmem [resolvable:$true] %s154
          %160 = dma.hbm_to_vmem [thread:$0]  %s153, 8192, %s155, %s144, 1024, 256, 16
        $region24: #{tpu_custom_call.1} parent=19 // pred_fallthru
          _
      $region20: #{tpu_custom_call.1} parent=5 // pred_fallthru
        _
      %p161 = scmp.le.s32.totalorder 1, %s15
      %p162 = scmp.lt.s32.totalorder %s15, 5
      %p163 = pnand %p161, %p162
      %p164 = pneg %p163
      // Predicated region
      $region25: #{tpu_custom_call.1} parent=5 // pred_check
        _
      $region26: #{tpu_custom_call.1} parent=5 // pred_check_branch
        %166 = sbr.rel (%p163) target = $region28
      $region27: #{tpu_custom_call.1} parent=5 // pred_region
        %s167 = ssub.s32 %s15, 1
        // Predicated region
        $region29: #{tpu_custom_call.1} parent=27 // pred_check
          %p168 = pneg %p53
        $region30: #{tpu_custom_call.1} parent=27 // pred_check_branch
          %170 = sbr.rel (%p168) target = $region32
        $region31: #{tpu_custom_call.1} parent=27 // pred_region
          %171 = dma.done [#allocation3], 256
        $region32: #{tpu_custom_call.1} parent=27 // pred_fallthru
          _
        %s172 = sand.u32 %s66, 1
        %s173 = scalar_lea.sflag [#allocation6], %s172
        %s174 = sand.u32 %s66, 1
        %s175 = smul.addr %s174, 512
        %s176 = scalar_lea.vmem [#allocation5], %s175
        // Predicated region
        $region33: #{tpu_custom_call.1} parent=27 // pred_check
          %p177 = pneg %p79
        $region34: #{tpu_custom_call.1} parent=27 // pred_check_branch
          %179 = sbr.rel (%p177) target = $region36
        $region35: #{tpu_custom_call.1} parent=27 // pred_region
          %180 = dma.done %s173, 8192
        $region36: #{tpu_custom_call.1} parent=27 // pred_fallthru
          _
        %p181 = pneg %p53
        %p182 = pneg %p50
        %s183 = sand.u32 %s66, 1
        %s184 = scalar_lea.sflag [#allocation6], %s183
        %s185 = sand.u32 %s66, 1
        %s186 = smul.addr %s185, 512
        %s187 = scalar_lea.vmem [#allocation5], %s186
        %p188 = pneg %p79
        %p189 = pneg %p76
        %p190 = pneg %p107
        %p191 = pneg %p104
        %s192 = sand.u32 %s94, 1
        %s193 = scalar_lea.sflag [#allocation4], %s192
        %s194 = sand.u32 %s94, 1
        %s195 = smul.addr %s194, 16
        %s196 = scalar_lea.vmem [#allocation7], %s195
        %s197 = smul.u32 2, %s25
        %s198 = smul.u32 2, %s25
        %v199 = vld [vmem:[#allocation2] sm:$0xff]
        %v200 = vld [vmem:[#allocation2 + $0x8] sm:$0xff]
        %v201 = vld [vmem:[%s176] sm:$0xff]
        %v202 = vld [vmem:[%s176 + $0x8] sm:$0xff]
        %v203 = vld [vmem:[%s176 + $0x10] sm:$0xff]
        %v204 = vld [vmem:[%s176 + $0x18] sm:$0xff]
        %v205 = vld [vmem:[%s176 + $0x20] sm:$0xff]
        %v206 = vld [vmem:[%s176 + $0x28] sm:$0xff]
        %v207 = vld [vmem:[%s176 + $0x30] sm:$0xff]
        %v208 = vld [vmem:[%s176 + $0x38] sm:$0xff]
        %v209 = vld [vmem:[%s176 + $0x40] sm:$0xff]
        %v210 = vld [vmem:[%s176 + $0x48] sm:$0xff]
        %v211 = vld [vmem:[%s176 + $0x50] sm:$0xff]
        %v212 = vld [vmem:[%s176 + $0x58] sm:$0xff]
        %v213 = vld [vmem:[%s176 + $0x60] sm:$0xff]
        %v214 = vld [vmem:[%s176 + $0x68] sm:$0xff]
        %v215 = vld [vmem:[%s176 + $0x70] sm:$0xff]
        %v216 = vld [vmem:[%s176 + $0x78] sm:$0xff]
        %v217 = vld [vmem:[%s176 + $0x80] sm:$0xff]
        %v218 = vld [vmem:[%s176 + $0x88] sm:$0xff]
        %v219 = vld [vmem:[%s176 + $0x90] sm:$0xff]
        %v220 = vld [vmem:[%s176 + $0x98] sm:$0xff]
        %v221 = vld [vmem:[%s176 + $0xa0] sm:$0xff]
        %v222 = vld [vmem:[%s176 + $0xa8] sm:$0xff]
        %v223 = vld [vmem:[%s176 + $0xb0] sm:$0xff]
        %v224 = vld [vmem:[%s176 + $0xb8] sm:$0xff]
        %v225 = vld [vmem:[%s176 + $0xc0] sm:$0xff]
        %v226 = vld [vmem:[%s176 + $0xc8] sm:$0xff]
        %v227 = vld [vmem:[%s176 + $0xd0] sm:$0xff]
        %v228 = vld [vmem:[%s176 + $0xd8] sm:$0xff]
        %v229 = vld [vmem:[%s176 + $0xe0] sm:$0xff]
        %v230 = vld [vmem:[%s176 + $0xe8] sm:$0xff]
        %v231 = vld [vmem:[%s176 + $0xf0] sm:$0xff]
        %v232 = vld [vmem:[%s176 + $0xf8] sm:$0xff]
        %v233 = vld [vmem:[%s176 + $0x100] sm:$0xff]
        %v234 = vld [vmem:[%s176 + $0x108] sm:$0xff]
        %v235 = vld [vmem:[%s176 + $0x110] sm:$0xff]
        %v236 = vld [vmem:[%s176 + $0x118] sm:$0xff]
        %v237 = vld [vmem:[%s176 + $0x120] sm:$0xff]
        %v238 = vld [vmem:[%s176 + $0x128] sm:$0xff]
        %v239 = vld [vmem:[%s176 + $0x130] sm:$0xff]
        %v240 = vld [vmem:[%s176 + $0x138] sm:$0xff]
        %v241 = vld [vmem:[%s176 + $0x140] sm:$0xff]
        %v242 = vld [vmem:[%s176 + $0x148] sm:$0xff]
        %v243 = vld [vmem:[%s176 + $0x150] sm:$0xff]
        %v244 = vld [vmem:[%s176 + $0x158] sm:$0xff]
        %v245 = vld [vmem:[%s176 + $0x160] sm:$0xff]
        %v246 = vld [vmem:[%s176 + $0x168] sm:$0xff]
        %v247 = vld [vmem:[%s176 + $0x170] sm:$0xff]
        %v248 = vld [vmem:[%s176 + $0x178] sm:$0xff]
        %v249 = vld [vmem:[%s176 + $0x180] sm:$0xff]
        %v250 = vld [vmem:[%s176 + $0x188] sm:$0xff]
        %v251 = vld [vmem:[%s176 + $0x190] sm:$0xff]
        %v252 = vld [vmem:[%s176 + $0x198] sm:$0xff]
        %v253 = vld [vmem:[%s176 + $0x1a0] sm:$0xff]
        %v254 = vld [vmem:[%s176 + $0x1a8] sm:$0xff]
        %v255 = vld [vmem:[%s176 + $0x1b0] sm:$0xff]
        %v256 = vld [vmem:[%s176 + $0x1b8] sm:$0xff]
        %v257 = vld [vmem:[%s176 + $0x1c0] sm:$0xff]
        %v258 = vld [vmem:[%s176 + $0x1c8] sm:$0xff]
        %v259 = vld [vmem:[%s176 + $0x1d0] sm:$0xff]
        %v260 = vld [vmem:[%s176 + $0x1d8] sm:$0xff]
        %v261 = vld [vmem:[%s176 + $0x1e0] sm:$0xff]
        %v262 = vld [vmem:[%s176 + $0x1e8] sm:$0xff]
        %v263 = vld [vmem:[%s176 + $0x1f0] sm:$0xff]
        %v264 = vld [vmem:[%s176 + $0x1f8] sm:$0xff]
        %265 = vmatprep.subr.mxu0 %v202
        %266 = vmatpush1.msra.mxu0 %v201
        %267 = vmatprep.subr.mxu0 %v204
        %268 = vmatpush1.msra.mxu0 %v203
        %269 = vmatprep.subr.mxu0 %v206
        %270 = vmatpush1.msra.mxu0 %v205
        %271 = vmatprep.subr.mxu0 %v208
        %272 = vmatpush1.msra.mxu0 %v207
        %273 = vmatprep.subr.mxu0 %v210
        %274 = vmatpush1.msra.mxu0 %v209
        %275 = vmatprep.subr.mxu0 %v212
        %276 = vmatpush1.msra.mxu0 %v211
        %277 = vmatprep.subr.mxu0 %v214
        %278 = vmatpush1.msra.mxu0 %v213
        %279 = vmatprep.subr.mxu0 %v216
        %280 = vmatpush1.msra.mxu0 %v215
        %281 = vmatprep.subr.mxu0 %v218
        %282 = vmatpush1.msra.mxu0 %v217
        %283 = vmatprep.subr.mxu0 %v220
        %284 = vmatpush1.msra.mxu0 %v219
        %285 = vmatprep.subr.mxu0 %v222
        %286 = vmatpush1.msra.mxu0 %v221
        %287 = vmatprep.subr.mxu0 %v224
        %288 = vmatpush1.msra.mxu0 %v223
        %289 = vmatprep.subr.mxu0 %v226
        %290 = vmatpush1.msra.mxu0 %v225
        %291 = vmatprep.subr.mxu0 %v228
        %292 = vmatpush1.msra.mxu0 %v227
        %293 = vmatprep.subr.mxu0 %v230
        %294 = vmatpush1.msra.mxu0 %v229
        %295 = vmatprep.subr.mxu0 %v232
        %296 = vmatpush1.msra.mxu0 %v231
        %297 = vmatprep.subr.mxu0 %v234
        %298 = vmatpush1.msra.mxu0 %v233
        %299 = vmatprep.subr.mxu0 %v236
        %300 = vmatpush1.msra.mxu0 %v235
        %301 = vmatprep.subr.mxu0 %v238
        %302 = vmatpush1.msra.mxu0 %v237
        %303 = vmatprep.subr.mxu0 %v240
        %304 = vmatpush1.msra.mxu0 %v239
        %305 = vmatprep.subr.mxu0 %v242
        %306 = vmatpush1.msra.mxu0 %v241
        %307 = vmatprep.subr.mxu0 %v244
        %308 = vmatpush1.msra.mxu0 %v243
        %309 = vmatprep.subr.mxu0 %v246
        %310 = vmatpush1.msra.mxu0 %v245
        %311 = vmatprep.subr.mxu0 %v248
        %312 = vmatpush1.msra.mxu0 %v247
        %313 = vmatprep.subr.mxu0 %v250
        %314 = vmatpush1.msra.mxu0 %v249
        %315 = vmatprep.subr.mxu0 %v252
        %316 = vmatpush1.msra.mxu0 %v251
        %317 = vmatprep.subr.mxu0 %v254
        %318 = vmatpush1.msra.mxu0 %v253
        %319 = vmatprep.subr.mxu0 %v256
        %320 = vmatpush1.msra.mxu0 %v255
        %321 = vmatprep.subr.mxu0 %v258
        %322 = vmatpush1.msra.mxu0 %v257
        %323 = vmatprep.subr.mxu0 %v260
        %324 = vmatpush1.msra.mxu0 %v259
        %325 = vmatprep.subr.mxu0 %v262
        %326 = vmatpush1.msra.mxu0 %v261
        %327 = vmatprep.subr.mxu0 %v264
        %328 = vmatpush1.msra.mxu0 %v263
        %329 = vmatprep.mubr.f32.mxu0 %v200
        %330 = vmatmul.mubr.f32.gmra.mrb[0].mxu0 %v199
        %v331 = vpop.f32.mrb[0].mxu0
        %v332 = vadd.f32 0.0, %v331
        %v333 = vpop.f32.mrb[0].mxu0
        %v334 = vadd.f32 0.0, %v333
        %335 = vdwg.mxu0
        %336 = vst [vmem:[%s196] sm:$0xff] %v332
        %337 = vst [vmem:[%s196 + $0x8] sm:$0xff] %v334
        %s338 = sand.u32 %s94, 1
        %s339 = scalar_lea.sflag [#allocation4], %s338
        %s340 = sand.u32 %s94, 1
        %s341 = smul.addr %s340, 16
        %s342 = scalar_lea.vmem [#allocation7], %s341
        // Predicated region
        $region37: #{tpu_custom_call.1} parent=27 // pred_check
          %p343 = pneg %p104
        $region38: #{tpu_custom_call.1} parent=27 // pred_check_branch
          %345 = sbr.rel (%p343) target = $region40
        $region39: #{tpu_custom_call.1} parent=27 // pred_region
          %s346 = smul.u32 2, %s25
          %s348 = ssub.s32 256, 256
          %349 = vsyncadd %s339, %s348
          %s350 = smul.addr %s24, 8
          %s351 = sadd.s32 %s346, %s350
          %s352 = smul.addr %s351, 128
          %s353 = scalar_lea.hbm %s2, %s352
          %s355 = sshll.u32 %s342, 4
          %s356 = int_to_ptr.vmem [resolvable:$true] %s355
          %358 = dma.vmem_to_hbm [thread:$0]  %s356, 256, %s353, %s339
        $region40: #{tpu_custom_call.1} parent=27 // pred_fallthru
          _
      $region28: #{tpu_custom_call.1} parent=5 // pred_fallthru
        _
      %p359 = scmp.le.s32.totalorder 2, %s15
      // Predicated region
      $region41: #{tpu_custom_call.1} parent=5 // pred_check
        %p360 = pneg %p359
      $region42: #{tpu_custom_call.1} parent=5 // pred_check_branch
        %362 = sbr.rel (%p360) target = $region44
      $region43: #{tpu_custom_call.1} parent=5 // pred_region
        %s363 = ssub.s32 %s15, 2
        // Predicated region
        $region45: #{tpu_custom_call.1} parent=43 // pred_check
          %p364 = pneg %p110
        $region46: #{tpu_custom_call.1} parent=43 // pred_check_branch
          %366 = sbr.rel (%p364) target = $region48
        $region47: #{tpu_custom_call.1} parent=43 // pred_region
          %s367 = sand.u32 %s95, 1
          %s368 = scalar_lea.sflag [#allocation4], %s367
          %s369 = sand.u32 %s95, 1
          %s370 = smul.addr %s369, 16
          %s371 = scalar_lea.vmem [#allocation7], %s370
          %372 = dma.done %s368, 256
        $region48: #{tpu_custom_call.1} parent=43 // pred_fallthru
          _
      $region44: #{tpu_custom_call.1} parent=5 // pred_fallthru
        _
    $region6: #{tpu_custom_call.1} parent=1 // loop_footer
      %s19 = sadd.s32 1, %s15
    $region7: #{tpu_custom_call.1} parent=1 // loop_footer_branch
      %14 = sbr.rel target = $region3
    $region8: #{tpu_custom_call.1} parent=1 // loop_exit
      _
    %373 = vsyncpa [#allocation3], 1
    %s374 = scalar_lea.sflag [#allocation3], 1
    %375 = vsyncpa %s374, 1
    %376 = vsyncpa [#allocation6], 1
    %s377 = scalar_lea.sflag [#allocation6], 1
    %378 = vsyncpa %s377, 1
    %379 = vsyncpa [#allocation4], 1
    %s380 = scalar_lea.sflag [#allocation4], 1
    %381 = vsyncpa %s380, 1

</llo_original>
